<compile_context>
chip_gen: v6e
topology: v6e:2x2x1
jax: 0.10.0
libtpu: 0.0.40
codegen_flags: <defaults>
</compile_context>

<pallas_src>
import math

import jax
import jax.numpy as jnp
from jax.experimental import pallas as pl
from jax.experimental.pallas import tpu as pltpu

# ----------------------------- module hyper-params ---------------------------
IN_CHANNELS = 4
OUT_CHANNELS = 6
HIDDEN_CHANNELS = 8
KERNEL_SIZE = 4
STRIDE = 2
PADDING_ADJUSTER = 1
PADDING = math.floor((KERNEL_SIZE - 1) / 2) + PADDING_ADJUSTER  # = 2
BN_EPS = 1e-5

N_BATCH = 2
SEQ_LEN = 17  # must be odd so the conv2 path and the stride-2 shortcut lengths match

# ------------------------- packed parameter slab layout -----------------------
# Channel-major layout: every weight is stored ready-to-use as a LEFT operand
# (output channels on sublanes, input channels on lanes), block-diagonal over
# the two batch samples so each stage is one matmul for the whole batch.
# Output channels are zero-padded from 6 to 8; the padded rows carry exact
# zeros through conv3/BN/shortcut and are sliced away in the wrapper.
CH_PAD = 8                                   # padded channel width (== hidden)
assert HIDDEN_CHANNELS == CH_PAD
assert OUT_CHANNELS <= CH_PAD and IN_CHANNELS <= CH_PAD
RB = N_BATCH * CH_PAD                        # 16: rows of a batch-stacked channel block
SLAB_LANES = RB                              # 16 lanes

R_A1 = 0                                     # (2*RB, N*Cin): [conv1 blockdiag ; shortcut blockdiag]
R_B1S = R_A1 + 2 * RB                        # (2*RB, 1):     [b1 tiled ; bs tiled]
R_W2 = R_B1S + 2 * RB                        # (K*RB, RB):    K tap blockdiag weights, stacked
R_B2 = R_W2 + KERNEL_SIZE * RB               # (RB, 1)
R_W3 = R_B2 + RB                             # (RB, RB)
R_B3 = R_W3 + RB                             # (RB, 1)
R_GAMMA = R_B3 + RB                          # (CH_PAD, 1)
R_BETA = R_GAMMA + CH_PAD                    # (CH_PAD, 1)
SLAB_ROWS = R_BETA + CH_PAD                  # 192  (all block offsets 8-aligned)


def _pack_params(W1, B1, W2, B2, W3, B3, WS, BS, GAMMA, BETA):
    """Pack PyTorch-layout Conv1d/BN parameters into one channel-major slab."""
    co_pad = CH_PAD - OUT_CHANNELS

    def bd(m):                    # block-diagonal over the batch dimension (N_BATCH == 2)
        z = jnp.zeros_like(m)
        return jnp.concatenate(
            [jnp.concatenate([m, z], axis=1), jnp.concatenate([z, m], axis=1)], axis=0)

    def col(v):                   # (r,) -> (r, SLAB_LANES), value in lane 0
        return jnp.pad(v[:, None], ((0, 0), (0, SLAB_LANES - 1)))

    def lanes(m):                 # pad lane dim to SLAB_LANES
        return jnp.pad(m, ((0, 0), (0, SLAB_LANES - m.shape[1])))

    w1m = W1[:, :, 0]                                          # (H, Cin)  - already (out, in)
    wsm = jnp.pad(WS[:, :, 0], ((0, co_pad), (0, 0)))          # (8, Cin)  zero-padded out rows
    w3m = jnp.pad(W3[:, :, 0], ((0, co_pad), (0, 0)))          # (8, H)
    b3p = jnp.pad(B3, (0, co_pad))
    bsp = jnp.pad(BS, (0, co_pad))
    gam = jnp.pad(GAMMA, (0, co_pad))                          # zero pad -> padded lanes stay 0
    bet = jnp.pad(BETA, (0, co_pad))

    blocks = [
        lanes(jnp.concatenate([bd(w1m), bd(wsm)], axis=0)),                           # R_A1
        col(jnp.concatenate([jnp.tile(B1, N_BATCH), jnp.tile(bsp, N_BATCH)])),        # R_B1S
        jnp.concatenate([bd(W2[:, :, k]) for k in range(KERNEL_SIZE)], axis=0),       # R_W2
        col(jnp.tile(B2, N_BATCH)),                                                   # R_B2
        bd(w3m),                                                                      # R_W3
        col(jnp.tile(b3p, N_BATCH)),                                                  # R_B3
        col(gam),                                                                     # R_GAMMA
        col(bet),                                                                     # R_BETA
    ]
    slab = jnp.concatenate(blocks, axis=0)
    assert slab.shape == (SLAB_ROWS, SLAB_LANES), slab.shape
    return slab


# --------------------------------- wrapper ------------------------------------
def tsy_residual_block_1d(x_ncl, param_slab):
    """x_ncl: (N, Cin, L) float32 (PyTorch layout). Returns (N, Cout, L_out)."""
    nb, cin, length = x_ncl.shape
    assert nb == N_BATCH and cin == IN_CHANNELS
    l_out = (length + 2 * PADDING - KERNEL_SIZE) // STRIDE + 1
    l_short = (length - 1) // STRIDE + 1
    assert l_out == l_short, "input length must make conv2 and shortcut lengths match (odd L)"
    assert 0 <= PADDING < KERNEL_SIZE  # G_PADDING doubles as the shortcut's stride-2 selector

    def kernel(x_ref, p_ref, o_ref):
        xv = x_ref[...]                                              # (N*Cin, L) = (8, 17)

        # ---- static, group-aligned slices of the packed parameter slab ----
        a1 = p_ref[R_A1:R_A1 + 2 * RB, :][:, :nb * IN_CHANNELS]     # (32, 8)  [W1bd ; WSbd]
        b1s = p_ref[R_B1S:R_B1S + 2 * RB, :][:, :1]                 # (32, 1)  [b1 ; bs]
        w2 = p_ref[R_W2:R_W2 + KERNEL_SIZE * RB, :]                 # (64, 16) K tap blocks
        b2 = p_ref[R_B2:R_B2 + RB, :][:, :1]                        # (16, 1)
        w3 = p_ref[R_W3:R_W3 + RB, :]                               # (16, 16)
        b3 = p_ref[R_B3:R_B3 + RB, :][:, :1]                        # (16, 1)
        gam = p_ref[R_GAMMA:R_GAMMA + CH_PAD, :][:, :1]             # (8, 1)
        bet = p_ref[R_BETA:R_BETA + CH_PAD, :][:, :1]               # (8, 1)

        # 0/1 selection matrices: fold conv2's zero-padding + stride-2 gather (and the
        # shortcut's stride-2 read) into plain MXU matmuls.  G_k[j, p] = [j == S*p + k - P].
        jj = jax.lax.broadcasted_iota(jnp.int32, (length, l_out), 0)
        pp = jax.lax.broadcasted_iota(jnp.int32, (length, l_out), 1)
        g = [(jj == STRIDE * pp + (k - PADDING)).astype(jnp.float32)
             for k in range(KERNEL_SIZE)]

        # ---- conv1 (1x1) + shortcut (1x1) for BOTH batches in ONE matmul ----
        pre = jnp.dot(a1, xv, preferred_element_type=jnp.float32) + b1s      # (32, L)
        h1 = jnp.maximum(pre[0:RB, :], 0.0)                                  # relu(conv1)
        sc_dense = pre[RB:2 * RB, :]                                         # shortcut @ every position

        # ---- conv2 (k=4, s=2, p=2): U = stacked-tap weights @ h1, then sum_k U_k @ G_k ----
        u = jnp.dot(w2, h1, preferred_element_type=jnp.float32)              # (4*RB, L)
        h2p = (jnp.dot(u[0 * RB:1 * RB, :], g[0], preferred_element_type=jnp.float32)
               + jnp.dot(u[1 * RB:2 * RB, :], g[1], preferred_element_type=jnp.float32)
               + jnp.dot(u[2 * RB:3 * RB, :], g[2], preferred_element_type=jnp.float32)
               + jnp.dot(u[3 * RB:4 * RB, :], g[3], preferred_element_type=jnp.float32))
        h2 = jnp.maximum(h2p + b2, 0.0)                                      # (RB, L_out)

        # ---- shortcut stride-2 pick (G_PADDING selects j == 2p) and conv3 (1x1) ----
        sc = jnp.dot(sc_dense, g[PADDING], preferred_element_type=jnp.float32)   # (RB, L_out)
        h3 = jnp.dot(w3, h2, preferred_element_type=jnp.float32) + b3            # (RB, L_out)

        # ---- BatchNorm1d (training-mode batch stats), two-pass mean / variance over
        #      the N*L_out samples per channel (rows n*8+c and (n+1)*8+c share stats). ----
        top, bot = h3[0:CH_PAD, :], h3[CH_PAD:RB, :]                         # (8, L_out) each
        inv_m = 1.0 / float(nb * l_out)
        mu = jnp.sum(top + bot, axis=1, keepdims=True) * inv_m               # (8, 1)
        dt, db = top - mu, bot - mu
        var = jnp.sum(dt * dt + db * db, axis=1, keepdims=True) * inv_m
        scale = jax.lax.rsqrt(var + BN_EPS) * gam                            # (8, 1)

        # ---- normalize + residual + ReLU; two 8-sublane-group-aligned stores ----
        o_ref[0:CH_PAD, :] = jnp.maximum(dt * scale + bet + sc[0:CH_PAD, :], 0.0)
        o_ref[CH_PAD:RB, :] = jnp.maximum(db * scale + bet + sc[CH_PAD:RB, :], 0.0)

    # NCL -> (N*Cin, L) is a FREE reshape (no transpose); output comes back in
    # channel-major form, so the wrapper only reshapes and drops channel padding.
    x2d = x_ncl.reshape(nb * cin, length)
    out2d = pl.pallas_call(
        kernel,
        out_shape=jax.ShapeDtypeStruct((RB, l_out), jnp.float32),
        in_specs=[pl.BlockSpec(memory_space=pltpu.MemorySpace.VMEM),
                  pl.BlockSpec(memory_space=pltpu.MemorySpace.VMEM)],
        out_specs=pl.BlockSpec(memory_space=pltpu.MemorySpace.VMEM),
    )(x2d, param_slab)
    return out2d.reshape(nb, CH_PAD, l_out)[:, :OUT_CHANNELS, :]


# ------------------------------ pure-JAX reference ----------------------------
def _conv1d_ref(x_ncl, w_oik, b, stride=1, padding=0):
    y = jax.lax.conv_general_dilated(
        x_ncl, w_oik, window_strides=(stride,), padding=[(padding, padding)],
        dimension_numbers=("NCH", "OIH", "NCH"))
    return y + b[None, :, None]


def _reference(x_ncl, torch_params):
    w1, b1, w2, b2, w3, b3, ws, bs, gamma, beta = torch_params
    h = jax.nn.relu(_conv1d_ref(x_ncl, w1, b1))
    h = jax.nn.relu(_conv1d_ref(h, w2, b2, stride=STRIDE, padding=PADDING))
    h = _conv1d_ref(h, w3, b3)
    mu = jnp.mean(h, axis=(0, 2))
    var = jnp.var(h, axis=(0, 2))
    h = (h - mu[None, :, None]) * jax.lax.rsqrt(var + BN_EPS)[None, :, None]
    h = h * gamma[None, :, None] + beta[None, :, None]
    sc = _conv1d_ref(x_ncl, ws, bs, stride=STRIDE)
    return jax.nn.relu(h + sc)


# ----------------------------------- main --------------------------------------
if __name__ == "__main__":
    key = jax.random.PRNGKey(0)
    keys = jax.random.split(key, 9)

    # PyTorch-layout parameters (Conv1d weight: (out, in, k)), deterministic init.
    W1 = jax.random.normal(keys[0], (HIDDEN_CHANNELS, IN_CHANNELS, 1), jnp.float32) * 0.1
    B1 = jax.random.normal(keys[1], (HIDDEN_CHANNELS,), jnp.float32) * 0.1
    W2 = jax.random.normal(keys[2], (HIDDEN_CHANNELS, HIDDEN_CHANNELS, KERNEL_SIZE), jnp.float32) * 0.1
    B2 = jax.random.normal(keys[3], (HIDDEN_CHANNELS,), jnp.float32) * 0.1
    W3 = jax.random.normal(keys[4], (OUT_CHANNELS, HIDDEN_CHANNELS, 1), jnp.float32) * 0.1
    B3 = jax.random.normal(keys[5], (OUT_CHANNELS,), jnp.float32) * 0.1
    WS = jax.random.normal(keys[6], (OUT_CHANNELS, IN_CHANNELS, 1), jnp.float32) * 0.1
    BS = jax.random.normal(keys[7], (OUT_CHANNELS,), jnp.float32) * 0.1
    GAMMA = jnp.ones((OUT_CHANNELS,), jnp.float32)   # BatchNorm default weight
    BETA = jnp.zeros((OUT_CHANNELS,), jnp.float32)   # BatchNorm default bias

    param_slab = _pack_params(W1, B1, W2, B2, W3, B3, WS, BS, GAMMA, BETA)

    x = jax.random.normal(keys[8], (N_BATCH, IN_CHANNELS, SEQ_LEN), jnp.float32)

    fwd = jax.jit(tsy_residual_block_1d)
    out = jax.block_until_ready(fwd(x, param_slab))

    ref = _reference(x, (W1, B1, W2, B2, W3, B3, WS, BS, GAMMA, BETA))
    assert out.shape == ref.shape, (out.shape, ref.shape)
    assert jnp.allclose(out, ref, atol=1e-4, rtol=1e-4), float(jnp.max(jnp.abs(out - ref)))

    print("KERNEL_OK")
</pallas_src>

<mosaic_0001>
module attributes {stable_mosaic.version = 11 : i64} {
  func.func @kernel(%arg0: memref<8x17xf32, #tpu.memory_space<vmem>>, %arg1: memref<192x16xf32, #tpu.memory_space<vmem>>, %arg2: memref<16x9xf32, #tpu.memory_space<vmem>>) attributes {dimension_semantics = [], scalar_prefetch = 0 : i64, scratch_operands = 0 : i64, tpu.core_type = #tpu.core_type<tc>} {
    %c0 = arith.constant 0 : index
    %c0_0 = arith.constant 0 : index
    %0 = vector.load %arg0[%c0, %c0_0] : memref<8x17xf32, #tpu.memory_space<vmem>>, vector<8x17xf32>
    %c0_1 = arith.constant 0 : index
    %c0_2 = arith.constant 0 : index
    %1 = vector.load %arg1[%c0_1, %c0_2] : memref<192x16xf32, #tpu.memory_space<vmem>>, vector<32x16xf32>
    %2 = vector.extract_strided_slice %1 {offsets = [0, 0], sizes = [32, 8], strides = [1, 1]} : vector<32x16xf32> to vector<32x8xf32>
    %c32 = arith.constant 32 : index
    %c0_3 = arith.constant 0 : index
    %3 = vector.load %arg1[%c32, %c0_3] : memref<192x16xf32, #tpu.memory_space<vmem>>, vector<32x16xf32>
    %4 = vector.extract_strided_slice %3 {offsets = [0, 0], sizes = [32, 1], strides = [1, 1]} : vector<32x16xf32> to vector<32x1xf32>
    %c64 = arith.constant 64 : index
    %c0_4 = arith.constant 0 : index
    %5 = vector.load %arg1[%c64, %c0_4] : memref<192x16xf32, #tpu.memory_space<vmem>>, vector<64x16xf32>
    %c128 = arith.constant 128 : index
    %c0_5 = arith.constant 0 : index
    %6 = vector.load %arg1[%c128, %c0_5] : memref<192x16xf32, #tpu.memory_space<vmem>>, vector<16x16xf32>
    %7 = vector.extract_strided_slice %6 {offsets = [0, 0], sizes = [16, 1], strides = [1, 1]} : vector<16x16xf32> to vector<16x1xf32>
    %c144 = arith.constant 144 : index
    %c0_6 = arith.constant 0 : index
    %8 = vector.load %arg1[%c144, %c0_6] : memref<192x16xf32, #tpu.memory_space<vmem>>, vector<16x16xf32>
    %c160 = arith.constant 160 : index
    %c0_7 = arith.constant 0 : index
    %9 = vector.load %arg1[%c160, %c0_7] : memref<192x16xf32, #tpu.memory_space<vmem>>, vector<16x16xf32>
    %10 = vector.extract_strided_slice %9 {offsets = [0, 0], sizes = [16, 1], strides = [1, 1]} : vector<16x16xf32> to vector<16x1xf32>
    %c176 = arith.constant 176 : index
    %c0_8 = arith.constant 0 : index
    %11 = vector.load %arg1[%c176, %c0_8] : memref<192x16xf32, #tpu.memory_space<vmem>>, vector<8x16xf32>
    %12 = vector.extract_strided_slice %11 {offsets = [0, 0], sizes = [8, 1], strides = [1, 1]} : vector<8x16xf32> to vector<8x1xf32>
    %c184 = arith.constant 184 : index
    %c0_9 = arith.constant 0 : index
    %13 = vector.load %arg1[%c184, %c0_9] : memref<192x16xf32, #tpu.memory_space<vmem>>, vector<8x16xf32>
    %14 = vector.extract_strided_slice %13 {offsets = [0, 0], sizes = [8, 1], strides = [1, 1]} : vector<8x16xf32> to vector<8x1xf32>
    %15 = tpu.iota {dimensions = array<i32: 0>} : vector<17x9xi32>
    %16 = tpu.iota {dimensions = array<i32: 1>} : vector<17x9xi32>
    %c2_i32 = arith.constant 2 : i32
    %17 = vector.broadcast %c2_i32 : i32 to vector<17x9xi32>
    %18 = arith.muli %17, %16 : vector<17x9xi32>
    %c-2_i32 = arith.constant -2 : i32
    %19 = vector.broadcast %c-2_i32 : i32 to vector<17x9xi32>
    %20 = arith.addi %18, %19 : vector<17x9xi32>
    %21 = arith.cmpi eq, %15, %20 : vector<17x9xi32>
    %22 = arith.extui %21 : vector<17x9xi1> to vector<17x9xi32>
    %23 = arith.sitofp %22 : vector<17x9xi32> to vector<17x9xf32>
    %c2_i32_10 = arith.constant 2 : i32
    %24 = vector.broadcast %c2_i32_10 : i32 to vector<17x9xi32>
    %25 = arith.muli %24, %16 : vector<17x9xi32>
    %c-1_i32 = arith.constant -1 : i32
    %26 = vector.broadcast %c-1_i32 : i32 to vector<17x9xi32>
    %27 = arith.addi %25, %26 : vector<17x9xi32>
    %28 = arith.cmpi eq, %15, %27 : vector<17x9xi32>
    %29 = arith.extui %28 : vector<17x9xi1> to vector<17x9xi32>
    %30 = arith.sitofp %29 : vector<17x9xi32> to vector<17x9xf32>
    %c2_i32_11 = arith.constant 2 : i32
    %31 = vector.broadcast %c2_i32_11 : i32 to vector<17x9xi32>
    %32 = arith.muli %31, %16 : vector<17x9xi32>
    %c0_i32 = arith.constant 0 : i32
    %33 = vector.broadcast %c0_i32 : i32 to vector<17x9xi32>
    %34 = arith.addi %32, %33 : vector<17x9xi32>
    %35 = arith.cmpi eq, %15, %34 : vector<17x9xi32>
    %36 = arith.extui %35 : vector<17x9xi1> to vector<17x9xi32>
    %37 = arith.sitofp %36 : vector<17x9xi32> to vector<17x9xf32>
    %c2_i32_12 = arith.constant 2 : i32
    %38 = vector.broadcast %c2_i32_12 : i32 to vector<17x9xi32>
    %39 = arith.muli %38, %16 : vector<17x9xi32>
    %c1_i32 = arith.constant 1 : i32
    %40 = vector.broadcast %c1_i32 : i32 to vector<17x9xi32>
    %41 = arith.addi %39, %40 : vector<17x9xi32>
    %42 = arith.cmpi eq, %15, %41 : vector<17x9xi32>
    %43 = arith.extui %42 : vector<17x9xi1> to vector<17x9xi32>
    %44 = arith.sitofp %43 : vector<17x9xi32> to vector<17x9xf32>
    %cst = arith.constant dense<0.000000e+00> : vector<32x17xf32>
    %45 = tpu.matmul %2, %0, %cst {dimension_numbers = #tpu.dot_dimension_numbers<[1], [0], [0], [1], [0, 0, 1, 1], [], []>} : vector<32x8xf32>, vector<8x17xf32>, vector<32x17xf32> -> vector<32x17xf32>
    %46 = vector.broadcast %4 : vector<32x1xf32> to vector<32x17xf32>
    %47 = arith.addf %45, %46 : vector<32x17xf32>
    %48 = vector.extract_strided_slice %47 {offsets = [0, 0], sizes = [16, 17], strides = [1, 1]} : vector<32x17xf32> to vector<16x17xf32>
    %cst_13 = arith.constant 0.000000e+00 : f32
    %49 = vector.broadcast %cst_13 : f32 to vector<16x17xf32>
    %50 = arith.maximumf %48, %49 : vector<16x17xf32>
    %51 = vector.extract_strided_slice %47 {offsets = [16, 0], sizes = [16, 17], strides = [1, 1]} : vector<32x17xf32> to vector<16x17xf32>
    %cst_14 = arith.constant dense<0.000000e+00> : vector<64x17xf32>
    %52 = tpu.matmul %5, %50, %cst_14 {dimension_numbers = #tpu.dot_dimension_numbers<[1], [0], [0], [1], [0, 0, 1, 1], [], []>} : vector<64x16xf32>, vector<16x17xf32>, vector<64x17xf32> -> vector<64x17xf32>
    %53 = vector.extract_strided_slice %52 {offsets = [0, 0], sizes = [16, 17], strides = [1, 1]} : vector<64x17xf32> to vector<16x17xf32>
    %cst_15 = arith.constant dense<0.000000e+00> : vector<16x9xf32>
    %54 = tpu.matmul %53, %23, %cst_15 {dimension_numbers = #tpu.dot_dimension_numbers<[1], [0], [0], [1], [0, 0, 1, 1], [], []>} : vector<16x17xf32>, vector<17x9xf32>, vector<16x9xf32> -> vector<16x9xf32>
    %55 = vector.extract_strided_slice %52 {offsets = [16, 0], sizes = [16, 17], strides = [1, 1]} : vector<64x17xf32> to vector<16x17xf32>
    %cst_16 = arith.constant dense<0.000000e+00> : vector<16x9xf32>
    %56 = tpu.matmul %55, %30, %cst_16 {dimension_numbers = #tpu.dot_dimension_numbers<[1], [0], [0], [1], [0, 0, 1, 1], [], []>} : vector<16x17xf32>, vector<17x9xf32>, vector<16x9xf32> -> vector<16x9xf32>
    %57 = arith.addf %54, %56 : vector<16x9xf32>
    %58 = vector.extract_strided_slice %52 {offsets = [32, 0], sizes = [16, 17], strides = [1, 1]} : vector<64x17xf32> to vector<16x17xf32>
    %cst_17 = arith.constant dense<0.000000e+00> : vector<16x9xf32>
    %59 = tpu.matmul %58, %37, %cst_17 {dimension_numbers = #tpu.dot_dimension_numbers<[1], [0], [0], [1], [0, 0, 1, 1], [], []>} : vector<16x17xf32>, vector<17x9xf32>, vector<16x9xf32> -> vector<16x9xf32>
    %60 = arith.addf %57, %59 : vector<16x9xf32>
    %61 = vector.extract_strided_slice %52 {offsets = [48, 0], sizes = [16, 17], strides = [1, 1]} : vector<64x17xf32> to vector<16x17xf32>
    %cst_18 = arith.constant dense<0.000000e+00> : vector<16x9xf32>
    %62 = tpu.matmul %61, %44, %cst_18 {dimension_numbers = #tpu.dot_dimension_numbers<[1], [0], [0], [1], [0, 0, 1, 1], [], []>} : vector<16x17xf32>, vector<17x9xf32>, vector<16x9xf32> -> vector<16x9xf32>
    %63 = arith.addf %60, %62 : vector<16x9xf32>
    %64 = vector.broadcast %7 : vector<16x1xf32> to vector<16x9xf32>
    %65 = arith.addf %63, %64 : vector<16x9xf32>
    %cst_19 = arith.constant 0.000000e+00 : f32
    %66 = vector.broadcast %cst_19 : f32 to vector<16x9xf32>
    %67 = arith.maximumf %65, %66 : vector<16x9xf32>
    %cst_20 = arith.constant dense<0.000000e+00> : vector<16x9xf32>
    %68 = tpu.matmul %51, %37, %cst_20 {dimension_numbers = #tpu.dot_dimension_numbers<[1], [0], [0], [1], [0, 0, 1, 1], [], []>} : vector<16x17xf32>, vector<17x9xf32>, vector<16x9xf32> -> vector<16x9xf32>
    %cst_21 = arith.constant dense<0.000000e+00> : vector<16x9xf32>
    %69 = tpu.matmul %8, %67, %cst_21 {dimension_numbers = #tpu.dot_dimension_numbers<[1], [0], [0], [1], [0, 0, 1, 1], [], []>} : vector<16x16xf32>, vector<16x9xf32>, vector<16x9xf32> -> vector<16x9xf32>
    %70 = vector.broadcast %10 : vector<16x1xf32> to vector<16x9xf32>
    %71 = arith.addf %69, %70 : vector<16x9xf32>
    %72 = vector.extract_strided_slice %71 {offsets = [0, 0], sizes = [8, 9], strides = [1, 1]} : vector<16x9xf32> to vector<8x9xf32>
    %73 = vector.extract_strided_slice %71 {offsets = [8, 0], sizes = [8, 9], strides = [1, 1]} : vector<16x9xf32> to vector<8x9xf32>
    %74 = arith.addf %72, %73 : vector<8x9xf32>
    %cst_22 = arith.constant dense<0.000000e+00> : vector<8xf32>
    %75 = vector.multi_reduction <add>, %74, %cst_22 [1] : vector<8x9xf32> to vector<8xf32>
    %76 = vector.shape_cast %75 : vector<8xf32> to vector<8x1xf32>
    %cst_23 = arith.constant 0.055555556 : f32
    %77 = vector.broadcast %cst_23 : f32 to vector<8x1xf32>
    %78 = arith.mulf %76, %77 : vector<8x1xf32>
    %79 = vector.broadcast %78 : vector<8x1xf32> to vector<8x9xf32>
    %80 = arith.subf %72, %79 : vector<8x9xf32>
    %81 = vector.broadcast %78 : vector<8x1xf32> to vector<8x9xf32>
    %82 = arith.subf %73, %81 : vector<8x9xf32>
    %83 = arith.mulf %80, %80 : vector<8x9xf32>
    %84 = arith.mulf %82, %82 : vector<8x9xf32>
    %85 = arith.addf %83, %84 : vector<8x9xf32>
    %cst_24 = arith.constant dense<0.000000e+00> : vector<8xf32>
    %86 = vector.multi_reduction <add>, %85, %cst_24 [1] : vector<8x9xf32> to vector<8xf32>
    %87 = vector.shape_cast %86 : vector<8xf32> to vector<8x1xf32>
    %cst_25 = arith.constant 0.055555556 : f32
    %88 = vector.broadcast %cst_25 : f32 to vector<8x1xf32>
    %89 = arith.mulf %87, %88 : vector<8x1xf32>
    %cst_26 = arith.constant 9.99999974E-6 : f32
    %90 = vector.broadcast %cst_26 : f32 to vector<8x1xf32>
    %91 = arith.addf %89, %90 : vector<8x1xf32>
    %92 = math.rsqrt %91 : vector<8x1xf32>
    %93 = arith.mulf %92, %12 : vector<8x1xf32>
    %94 = vector.broadcast %93 : vector<8x1xf32> to vector<8x9xf32>
    %95 = arith.mulf %80, %94 : vector<8x9xf32>
    %96 = vector.broadcast %14 : vector<8x1xf32> to vector<8x9xf32>
    %97 = arith.addf %95, %96 : vector<8x9xf32>
    %98 = vector.extract_strided_slice %68 {offsets = [0, 0], sizes = [8, 9], strides = [1, 1]} : vector<16x9xf32> to vector<8x9xf32>
    %99 = arith.addf %97, %98 : vector<8x9xf32>
    %cst_27 = arith.constant 0.000000e+00 : f32
    %100 = vector.broadcast %cst_27 : f32 to vector<8x9xf32>
    %101 = arith.maximumf %99, %100 : vector<8x9xf32>
    %c0_28 = arith.constant 0 : index
    %c0_29 = arith.constant 0 : index
    %102 = vector.load %arg2[%c0_28, %c0_29] : memref<16x9xf32, #tpu.memory_space<vmem>>, vector<8x9xf32>
    tpu.vector_store %arg2[%c0_28, %c0_29], %101 {strides = array<i32>} : memref<16x9xf32, #tpu.memory_space<vmem>>, vector<8x9xf32>,
    %103 = vector.broadcast %93 : vector<8x1xf32> to vector<8x9xf32>
    %104 = arith.mulf %82, %103 : vector<8x9xf32>
    %105 = vector.broadcast %14 : vector<8x1xf32> to vector<8x9xf32>
    %106 = arith.addf %104, %105 : vector<8x9xf32>
    %107 = vector.extract_strided_slice %68 {offsets = [8, 0], sizes = [8, 9], strides = [1, 1]} : vector<16x9xf32> to vector<8x9xf32>
    %108 = arith.addf %106, %107 : vector<8x9xf32>
    %cst_30 = arith.constant 0.000000e+00 : f32
    %109 = vector.broadcast %cst_30 : f32 to vector<8x9xf32>
    %110 = arith.maximumf %108, %109 : vector<8x9xf32>
    %c8 = arith.constant 8 : index
    %c0_31 = arith.constant 0 : index
    %111 = vector.load %arg2[%c8, %c0_31] : memref<16x9xf32, #tpu.memory_space<vmem>>, vector<8x9xf32>
    tpu.vector_store %arg2[%c8, %c0_31], %110 {strides = array<i32>} : memref<16x9xf32, #tpu.memory_space<vmem>>, vector<8x9xf32>,
    return
  }
}

</mosaic_0001>

<llo_original>
// kernel: tsy_residual_block_1d.1
$region0: #{tsy_residual_block_1d.1}
  #allocation0 [shape = 'u32[]', space=smem, size = 0x4, offset = 0x4, fixed_abs, tag = 'smem constant byte address 0x4 - core index']
  #allocation1 [shape = 'u32[144,128]{1,0:T(1,128)}', space=vmem, size = 0x12000, scoped, tag = 'internal scratch']
  %s0 = inlined_call_operand.vmem [shape: f32[8,17], index: 0, kind: input, shape index: {}]
  %s1 = inlined_call_operand.vmem [shape: f32[192,16], index: 1, kind: input, shape index: {}]
  %s2 = inlined_call_operand.vmem [shape: f32[16,9], index: 2, kind: output, shape index: {}]
  %s3 = sld [smem:[#allocation0]]
  $region18: #{tsy_residual_block_1d.1} parent=0
    _
  %s5 = ssub.s32 1, %s3
  %s6 = scalar_select 0, %s5, %s3
  // Predicated region
  $region2: #{tsy_residual_block_1d.1} parent=0 // pred_check
    _
  $region3: #{tsy_residual_block_1d.1} parent=0 // pred_check_branch
    %8 = sbr.rel (0) target = $region5
  $region4: #{tsy_residual_block_1d.1} parent=0 // pred_region
    _
  $region5: #{tsy_residual_block_1d.1} parent=0 // pred_fallthru
    _
  // Predicated region
  $region6: #{tsy_residual_block_1d.1} parent=0 // pred_check
    _
  $region7: #{tsy_residual_block_1d.1} parent=0 // pred_check_branch
    %10 = sbr.rel (0) target = $region9
  $region8: #{tsy_residual_block_1d.1} parent=0 // pred_region
    _
  $region9: #{tsy_residual_block_1d.1} parent=0 // pred_fallthru
    _
  %v11 = vld [vmem:[%s0] sm:$0xff]
  %v12 = vld [vmem:[%s1] sm:$0xff]
  %v13 = vld [vmem:[%s1 + $0x8] sm:$0xff]
  %v14 = vld [vmem:[%s1 + $0x10] sm:$0xff]
  %v15 = vld [vmem:[%s1 + $0x18] sm:$0xff]
  %v16 = vld [vmem:[%s1 + $0x20] sm:$0xff]
  %v17 = vld [vmem:[%s1 + $0x28] sm:$0xff]
  %v18 = vld [vmem:[%s1 + $0x30] sm:$0xff]
  %v19 = vld [vmem:[%s1 + $0x38] sm:$0xff]
  %v20 = vld [vmem:[%s1 + $0x40] sm:$0xff]
  %v21 = vld [vmem:[%s1 + $0x48] sm:$0xff]
  %v22 = vld [vmem:[%s1 + $0x50] sm:$0xff]
  %v23 = vld [vmem:[%s1 + $0x58] sm:$0xff]
  %v24 = vld [vmem:[%s1 + $0x60] sm:$0xff]
  %v25 = vld [vmem:[%s1 + $0x68] sm:$0xff]
  %v26 = vld [vmem:[%s1 + $0x70] sm:$0xff]
  %v27 = vld [vmem:[%s1 + $0x78] sm:$0xff]
  %v28 = vld [vmem:[%s1 + $0x80] sm:$0xff]
  %v29 = vld [vmem:[%s1 + $0x88] sm:$0xff]
  %v30 = vld [vmem:[%s1 + $0x90] sm:$0xff]
  %v31 = vld [vmem:[%s1 + $0x98] sm:$0xff]
  %v32 = vld [vmem:[%s1 + $0xa0] sm:$0xff]
  %v33 = vld [vmem:[%s1 + $0xa8] sm:$0xff]
  %v34 = vld [vmem:[%s1 + $0xb0] sm:$0xff]
  %v35 = vld [vmem:[%s1 + $0xb8] sm:$0xff]
  %v36 = vlaneseq
  %v37 = vshrl.u32 %v36, 7
  %v38 = vadd.s32 %v37, 8
  %v39 = vadd.s32 %v37, 16
  %v40 = vlaneseq
  %v41 = vand.u32 %v40, 127
  %v42 = vmul.u32 %v41, 2
  %v43 = vadd.s32 %v42, 4294967294
  %vm44 = vcmp.eq.s32.totalorder %v37, %v43
  %vm45 = vcmp.eq.s32.totalorder %v38, %v43
  %vm46 = vcmp.eq.s32.totalorder %v39, %v43
  %v47 = vsel %vm44, 1, 0
  %v48 = vsel %vm45, 1, 0
  %v49 = vsel %vm46, 1, 0
  %v50 = vcvt.s32.f32 %v47
  %v51 = vcvt.s32.f32 %v48
  %v52 = vcvt.s32.f32 %v49
  %v53 = vadd.s32 %v42, 4294967295
  %vm54 = vcmp.eq.s32.totalorder %v37, %v53
  %vm55 = vcmp.eq.s32.totalorder %v38, %v53
  %vm56 = vcmp.eq.s32.totalorder %v39, %v53
  %v57 = vsel %vm54, 1, 0
  %v58 = vsel %vm55, 1, 0
  %v59 = vsel %vm56, 1, 0
  %v60 = vcvt.s32.f32 %v57
  %v61 = vcvt.s32.f32 %v58
  %v62 = vcvt.s32.f32 %v59
  %vm63 = vcmp.eq.s32.totalorder %v37, %v42
  %vm64 = vcmp.eq.s32.totalorder %v38, %v42
  %vm65 = vcmp.eq.s32.totalorder %v39, %v42
  %v66 = vsel %vm63, 1, 0
  %v67 = vsel %vm64, 1, 0
  %v68 = vsel %vm65, 1, 0
  %v69 = vcvt.s32.f32 %v66
  %v70 = vcvt.s32.f32 %v67
  %v71 = vcvt.s32.f32 %v68
  %v72 = vadd.s32 %v42, 1
  %vm73 = vcmp.eq.s32.totalorder %v37, %v72
  %vm74 = vcmp.eq.s32.totalorder %v38, %v72
  %vm75 = vcmp.eq.s32.totalorder %v39, %v72
  %v76 = vsel %vm73, 1, 0
  %v77 = vsel %vm74, 1, 0
  %v78 = vsel %vm75, 1, 0
  %v79 = vcvt.s32.f32 %v76
  %v80 = vcvt.s32.f32 %v77
  %v81 = vcvt.s32.f32 %v78
  %83 = vset.pattern.permute.xlu0 0
  %84 = vperm.xlu0 %83, %v16
  %v85 = vpop.permute.xlu0 %84
  %88 = vset.pattern.permute.xlu0 0
  %89 = vperm.xlu0 %88, %v17
  %v90 = vpop.permute.xlu0 %89
  %93 = vset.pattern.permute.xlu0 0
  %94 = vperm.xlu0 %93, %v18
  %v95 = vpop.permute.xlu0 %94
  %98 = vset.pattern.permute.xlu0 0
  %99 = vperm.xlu0 %98, %v19
  %v100 = vpop.permute.xlu0 %99
  %vm102 = vcmask 64512
  %v104 = vsel %vm102, %v12, 0
  %v107 = vsel %vm102, %v13, 0
  %v110 = vsel %vm102, %v14, 0
  %v113 = vsel %vm102, %v15, 0
  %115 = vmatprep.subr.mxu0 0.0
  %116 = vmatpush1.msra.mxu0 0.0
  %117 = vmatprep.subr.mxu0 0.0
  %118 = vmatpush1.msra.mxu0 0.0
  %119 = vmatprep.subr.mxu0 0.0
  %120 = vmatpush1.msra.mxu0 0.0
  %121 = vmatprep.subr.mxu0 0.0
  %122 = vmatpush1.msra.mxu0 0.0
  %123 = vmatprep.subr.mxu0 0.0
  %124 = vmatpush1.msra.mxu0 0.0
  %125 = vmatprep.subr.mxu0 0.0
  %126 = vmatpush1.msra.mxu0 0.0
  %127 = vmatprep.subr.mxu0 0.0
  %128 = vmatpush1.msra.mxu0 0.0
  %129 = vmatprep.subr.mxu0 0.0
  %130 = vmatpush1.msra.mxu0 0.0
  %131 = vmatprep.subr.mxu0 0.0
  %132 = vmatpush1.msra.mxu0 0.0
  %133 = vmatprep.subr.mxu0 0.0
  %134 = vmatpush1.msra.mxu0 0.0
  %135 = vmatprep.subr.mxu0 0.0
  %136 = vmatpush1.msra.mxu0 0.0
  %137 = vmatprep.subr.mxu0 0.0
  %138 = vmatpush1.msra.mxu0 0.0
  %139 = vmatprep.subr.mxu0 0.0
  %140 = vmatpush1.msra.mxu0 0.0
  %141 = vmatprep.subr.mxu0 0.0
  %142 = vmatpush1.msra.mxu0 0.0
  %143 = vmatprep.subr.mxu0 0.0
  %144 = vmatpush1.msra.mxu0 0.0
  %145 = vmatprep.subr.mxu0 0.0
  %146 = vmatpush1.msra.mxu0 %v11
  %147 = vmatprep.subr.mxu0 0.0
  %148 = vmatpush2.msra.mxu0 0.0
  %149 = vmatprep.subr.mxu0 0.0
  %150 = vmatpush2.msra.mxu0 0.0
  %151 = vmatprep.subr.mxu0 0.0
  %152 = vmatpush2.msra.mxu0 0.0
  %153 = vmatprep.subr.mxu0 0.0
  %154 = vmatpush2.msra.mxu0 0.0
  %155 = vmatprep.subr.mxu0 0.0
  %156 = vmatpush2.msra.mxu0 0.0
  %157 = vmatprep.subr.mxu0 0.0
  %158 = vmatpush2.msra.mxu0 0.0
  %159 = vmatprep.subr.mxu0 0.0
  %160 = vmatpush2.msra.mxu0 0.0
  %161 = vmatprep.subr.mxu0 0.0
  %162 = vmatpush2.msra.mxu0 0.0
  %163 = vmatprep.subr.mxu0 0.0
  %164 = vmatpush2.msra.mxu0 0.0
  %165 = vmatprep.subr.mxu0 0.0
  %166 = vmatpush2.msra.mxu0 0.0
  %167 = vmatprep.subr.mxu0 0.0
  %168 = vmatpush2.msra.mxu0 0.0
  %169 = vmatprep.subr.mxu0 0.0
  %170 = vmatpush2.msra.mxu0 0.0
  %171 = vmatprep.subr.mxu0 0.0
  %172 = vmatpush2.msra.mxu0 0.0
  %173 = vmatprep.subr.mxu0 0.0
  %174 = vmatpush2.msra.mxu0 0.0
  %175 = vmatprep.subr.mxu0 0.0
  %176 = vmatpush2.msra.mxu0 0.0
  %177 = vmatprep.subr.mxu0 0.0
  %178 = vmatpush2.msra.mxu0 0.0
  %179 = vmatprep.mubr.f32.mxu0 0.0
  %180 = vmatmul.mubr.f32.gmra.mxu0 %v104
  %v181 = vpop.f32.mrf.mxu0
  %v182 = vadd.f32 %v85, %v181
  %v183 = vpop.f32.mrf.mxu0
  %184 = vmatprep.mubr.f32.mxu0 0.0
  %185 = vmatmul.mubr.f32.gmra.mxu0 %v107
  %v186 = vpop.f32.mrf.mxu0
  %v187 = vadd.f32 %v90, %v186
  %v188 = vpop.f32.mrf.mxu0
  %189 = vmatprep.mubr.f32.mxu0 0.0
  %190 = vmatmul.mubr.f32.gmra.mxu0 %v110
  %v191 = vpop.f32.mrf.mxu0
  %v192 = vadd.f32 %v95, %v191
  %v193 = vpop.f32.mrf.mxu0
  %194 = vmatprep.mubr.f32.mxu0 0.0
  %195 = vmatmul.mubr.f32.gmra.mxu0 %v113
  %v196 = vpop.f32.mrf.mxu0
  %v197 = vadd.f32 %v100, %v196
  %v198 = vpop.f32.mrf.mxu0
  %199 = vdwg.mxu0
  %v200 = vmax.f32 %v182, 0.0
  %v201 = vmax.f32 %v187, 0.0
  %vm202 = vcmask 130048
  %v204 = vsel %vm202, %v20, 0
  %v207 = vsel %vm202, %v21, 0
  %v210 = vsel %vm202, %v22, 0
  %v213 = vsel %vm202, %v23, 0
  %v216 = vsel %vm202, %v24, 0
  %v219 = vsel %vm202, %v25, 0
  %v222 = vsel %vm202, %v26, 0
  %v225 = vsel %vm202, %v27, 0
  %227 = vmatprep.subr.mxu0 0.0
  %228 = vmatpush1.msra.mxu0 0.0
  %229 = vmatprep.subr.mxu0 0.0
  %230 = vmatpush1.msra.mxu0 0.0
  %231 = vmatprep.subr.mxu0 0.0
  %232 = vmatpush1.msra.mxu0 0.0
  %233 = vmatprep.subr.mxu0 0.0
  %234 = vmatpush1.msra.mxu0 0.0
  %235 = vmatprep.subr.mxu0 0.0
  %236 = vmatpush1.msra.mxu0 0.0
  %237 = vmatprep.subr.mxu0 0.0
  %238 = vmatpush1.msra.mxu0 0.0
  %239 = vmatprep.subr.mxu0 0.0
  %240 = vmatpush1.msra.mxu0 0.0
  %241 = vmatprep.subr.mxu0 0.0
  %242 = vmatpush1.msra.mxu0 0.0
  %243 = vmatprep.subr.mxu0 0.0
  %244 = vmatpush1.msra.mxu0 0.0
  %245 = vmatprep.subr.mxu0 0.0
  %246 = vmatpush1.msra.mxu0 0.0
  %247 = vmatprep.subr.mxu0 0.0
  %248 = vmatpush1.msra.mxu0 0.0
  %249 = vmatprep.subr.mxu0 0.0
  %250 = vmatpush1.msra.mxu0 0.0
  %251 = vmatprep.subr.mxu0 0.0
  %252 = vmatpush1.msra.mxu0 0.0
  %253 = vmatprep.subr.mxu0 0.0
  %254 = vmatpush1.msra.mxu0 0.0
  %255 = vmatprep.subr.mxu0 0.0
  %256 = vmatpush1.msra.mxu0 %v201
  %257 = vmatprep.subr.mxu0 0.0
  %258 = vmatpush1.msra.mxu0 %v200
  %259 = vmatprep.subr.mxu0 0.0
  %260 = vmatpush2.msra.mxu0 0.0
  %261 = vmatprep.subr.mxu0 0.0
  %262 = vmatpush2.msra.mxu0 0.0
  %263 = vmatprep.subr.mxu0 0.0
  %264 = vmatpush2.msra.mxu0 0.0
  %265 = vmatprep.subr.mxu0 0.0
  %266 = vmatpush2.msra.mxu0 0.0
  %267 = vmatprep.subr.mxu0 0.0
  %268 = vmatpush2.msra.mxu0 0.0
  %269 = vmatprep.subr.mxu0 0.0
  %270 = vmatpush2.msra.mxu0 0.0
  %271 = vmatprep.subr.mxu0 0.0
  %272 = vmatpush2.msra.mxu0 0.0
  %273 = vmatprep.subr.mxu0 0.0
  %274 = vmatpush2.msra.mxu0 0.0
  %275 = vmatprep.subr.mxu0 0.0
  %276 = vmatpush2.msra.mxu0 0.0
  %277 = vmatprep.subr.mxu0 0.0
  %278 = vmatpush2.msra.mxu0 0.0
  %279 = vmatprep.subr.mxu0 0.0
  %280 = vmatpush2.msra.mxu0 0.0
  %281 = vmatprep.subr.mxu0 0.0
  %282 = vmatpush2.msra.mxu0 0.0
  %283 = vmatprep.subr.mxu0 0.0
  %284 = vmatpush2.msra.mxu0 0.0
  %285 = vmatprep.subr.mxu0 0.0
  %286 = vmatpush2.msra.mxu0 0.0
  %287 = vmatprep.subr.mxu0 0.0
  %288 = vmatpush2.msra.mxu0 0.0
  %289 = vmatprep.subr.mxu0 0.0
  %290 = vmatpush2.msra.mxu0 0.0
  %291 = vmatprep.mubr.f32.mxu0 0.0
  %292 = vmatmul.mubr.f32.gmra.mxu0 %v204
  %v293 = vpop.f32.mrf.mxu0
  %v294 = vadd.f32 0.0, %v293
  %v295 = vpop.f32.mrf.mxu0
  %296 = vmatprep.mubr.f32.mxu0 0.0
  %297 = vmatmul.mubr.f32.gmra.mxu0 %v207
  %v298 = vpop.f32.mrf.mxu0
  %v299 = vadd.f32 0.0, %v298
  %v300 = vpop.f32.mrf.mxu0
  %301 = vmatprep.mubr.f32.mxu0 0.0
  %302 = vmatmul.mubr.f32.gmra.mxu0 %v210
  %v303 = vpop.f32.mrf.mxu0
  %v304 = vadd.f32 0.0, %v303
  %v305 = vpop.f32.mrf.mxu0
  %306 = vmatprep.mubr.f32.mxu0 0.0
  %307 = vmatmul.mubr.f32.gmra.mxu0 %v213
  %v308 = vpop.f32.mrf.mxu0
  %v309 = vadd.f32 0.0, %v308
  %v310 = vpop.f32.mrf.mxu0
  %311 = vmatprep.mubr.f32.mxu0 0.0
  %312 = vmatmul.mubr.f32.gmra.mxu0 %v216
  %v313 = vpop.f32.mrf.mxu0
  %v314 = vadd.f32 0.0, %v313
  %v315 = vpop.f32.mrf.mxu0
  %316 = vmatprep.mubr.f32.mxu0 0.0
  %317 = vmatmul.mubr.f32.gmra.mxu0 %v219
  %v318 = vpop.f32.mrf.mxu0
  %v319 = vadd.f32 0.0, %v318
  %v320 = vpop.f32.mrf.mxu0
  %321 = vmatprep.mubr.f32.mxu0 0.0
  %322 = vmatmul.mubr.f32.gmra.mxu0 %v222
  %v323 = vpop.f32.mrf.mxu0
  %v324 = vadd.f32 0.0, %v323
  %v325 = vpop.f32.mrf.mxu0
  %326 = vmatprep.mubr.f32.mxu0 0.0
  %327 = vmatmul.mubr.f32.gmra.mxu0 %v225
  %v328 = vpop.f32.mrf.mxu0
  %v329 = vadd.f32 0.0, %v328
  %v330 = vpop.f32.mrf.mxu0
  %331 = vdwg.mxu0
  %vm332 = vcmask 138240
  %v334 = vsel %vm332, %v304, 0
  %v337 = vsel %vm332, %v309, 0
  %vm339 = vcmask 1040384
  %v341 = vsel %vm339, %v62, 0
  %343 = vmatprep.subr.mxu0 0.0
  %344 = vmatpush1.msra.mxu0 0.0
  %345 = vmatprep.subr.mxu0 0.0
  %346 = vmatpush1.msra.mxu0 0.0
  %347 = vmatprep.subr.mxu0 0.0
  %348 = vmatpush1.msra.mxu0 0.0
  %349 = vmatprep.subr.mxu0 0.0
  %350 = vmatpush1.msra.mxu0 0.0
  %351 = vmatprep.subr.mxu0 0.0
  %352 = vmatpush1.msra.mxu0 0.0
  %353 = vmatprep.subr.mxu0 0.0
  %354 = vmatpush1.msra.mxu0 0.0
  %355 = vmatprep.subr.mxu0 0.0
  %356 = vmatpush1.msra.mxu0 0.0
  %357 = vmatprep.subr.mxu0 0.0
  %358 = vmatpush1.msra.mxu0 0.0
  %359 = vmatprep.subr.mxu0 0.0
  %360 = vmatpush1.msra.mxu0 0.0
  %361 = vmatprep.subr.mxu0 0.0
  %362 = vmatpush1.msra.mxu0 0.0
  %363 = vmatprep.subr.mxu0 0.0
  %364 = vmatpush1.msra.mxu0 0.0
  %365 = vmatprep.subr.mxu0 0.0
  %366 = vmatpush1.msra.mxu0 0.0
  %367 = vmatprep.subr.mxu0 0.0
  %368 = vmatpush1.msra.mxu0 0.0
  %369 = vmatprep.subr.mxu0 0.0
  %370 = vmatpush1.msra.mxu0 %v341
  %371 = vmatprep.subr.mxu0 0.0
  %372 = vmatpush1.msra.mxu0 %v61
  %373 = vmatprep.subr.mxu0 0.0
  %374 = vmatpush1.msra.mxu0 %v60
  %375 = vmatprep.subr.mxu0 0.0
  %376 = vmatpush2.msra.mxu0 0.0
  %377 = vmatprep.subr.mxu0 0.0
  %378 = vmatpush2.msra.mxu0 0.0
  %379 = vmatprep.subr.mxu0 0.0
  %380 = vmatpush2.msra.mxu0 0.0
  %381 = vmatprep.subr.mxu0 0.0
  %382 = vmatpush2.msra.mxu0 0.0
  %383 = vmatprep.subr.mxu0 0.0
  %384 = vmatpush2.msra.mxu0 0.0
  %385 = vmatprep.subr.mxu0 0.0
  %386 = vmatpush2.msra.mxu0 0.0
  %387 = vmatprep.subr.mxu0 0.0
  %388 = vmatpush2.msra.mxu0 0.0
  %389 = vmatprep.subr.mxu0 0.0
  %390 = vmatpush2.msra.mxu0 0.0
  %391 = vmatprep.subr.mxu0 0.0
  %392 = vmatpush2.msra.mxu0 0.0
  %393 = vmatprep.subr.mxu0 0.0
  %394 = vmatpush2.msra.mxu0 0.0
  %395 = vmatprep.subr.mxu0 0.0
  %396 = vmatpush2.msra.mxu0 0.0
  %397 = vmatprep.subr.mxu0 0.0
  %398 = vmatpush2.msra.mxu0 0.0
  %399 = vmatprep.subr.mxu0 0.0
  %400 = vmatpush2.msra.mxu0 0.0
  %401 = vmatprep.subr.mxu0 0.0
  %402 = vmatpush2.msra.mxu0 0.0
  %403 = vmatprep.subr.mxu0 0.0
  %404 = vmatpush2.msra.mxu0 0.0
  %405 = vmatprep.subr.mxu0 0.0
  %406 = vmatpush2.msra.mxu0 0.0
  %407 = vmatprep.mubr.f32.mxu0 0.0
  %408 = vmatmul.mubr.f32.gmra.mxu0 %v334
  %v409 = vpop.f32.mrf.mxu0
  %v410 = vadd.f32 0.0, %v409
  %v411 = vpop.f32.mrf.mxu0
  %412 = vmatprep.mubr.f32.mxu0 0.0
  %413 = vmatmul.mubr.f32.gmra.mxu0 %v337
  %v414 = vpop.f32.mrf.mxu0
  %v415 = vadd.f32 0.0, %v414
  %v416 = vpop.f32.mrf.mxu0
  %417 = vdwg.mxu0
  %v419 = vsel %vm332, %v294, 0
  %v422 = vsel %vm332, %v299, 0
  %v425 = vsel %vm339, %v52, 0
  %427 = vmatprep.subr.mxu0 0.0
  %428 = vmatpush1.msra.mxu0 0.0
  %429 = vmatprep.subr.mxu0 0.0
  %430 = vmatpush1.msra.mxu0 0.0
  %431 = vmatprep.subr.mxu0 0.0
  %432 = vmatpush1.msra.mxu0 0.0
  %433 = vmatprep.subr.mxu0 0.0
  %434 = vmatpush1.msra.mxu0 0.0
  %435 = vmatprep.subr.mxu0 0.0
  %436 = vmatpush1.msra.mxu0 0.0
  %437 = vmatprep.subr.mxu0 0.0
  %438 = vmatpush1.msra.mxu0 0.0
  %439 = vmatprep.subr.mxu0 0.0
  %440 = vmatpush1.msra.mxu0 0.0
  %441 = vmatprep.subr.mxu0 0.0
  %442 = vmatpush1.msra.mxu0 0.0
  %443 = vmatprep.subr.mxu0 0.0
  %444 = vmatpush1.msra.mxu0 0.0
  %445 = vmatprep.subr.mxu0 0.0
  %446 = vmatpush1.msra.mxu0 0.0
  %447 = vmatprep.subr.mxu0 0.0
  %448 = vmatpush1.msra.mxu0 0.0
  %449 = vmatprep.subr.mxu0 0.0
  %450 = vmatpush1.msra.mxu0 0.0
  %451 = vmatprep.subr.mxu0 0.0
  %452 = vmatpush1.msra.mxu0 0.0
  %453 = vmatprep.subr.mxu0 0.0
  %454 = vmatpush1.msra.mxu0 %v425
  %455 = vmatprep.subr.mxu0 0.0
  %456 = vmatpush1.msra.mxu0 %v51
  %457 = vmatprep.subr.mxu0 0.0
  %458 = vmatpush1.msra.mxu0 %v50
  %459 = vmatprep.subr.mxu0 0.0
  %460 = vmatpush2.msra.mxu0 0.0
  %461 = vmatprep.subr.mxu0 0.0
  %462 = vmatpush2.msra.mxu0 0.0
  %463 = vmatprep.subr.mxu0 0.0
  %464 = vmatpush2.msra.mxu0 0.0
  %465 = vmatprep.subr.mxu0 0.0
  %466 = vmatpush2.msra.mxu0 0.0
  %467 = vmatprep.subr.mxu0 0.0
  %468 = vmatpush2.msra.mxu0 0.0
  %469 = vmatprep.subr.mxu0 0.0
  %470 = vmatpush2.msra.mxu0 0.0
  %471 = vmatprep.subr.mxu0 0.0
  %472 = vmatpush2.msra.mxu0 0.0
  %473 = vmatprep.subr.mxu0 0.0
  %474 = vmatpush2.msra.mxu0 0.0
  %475 = vmatprep.subr.mxu0 0.0
  %476 = vmatpush2.msra.mxu0 0.0
  %477 = vmatprep.subr.mxu0 0.0
  %478 = vmatpush2.msra.mxu0 0.0
  %479 = vmatprep.subr.mxu0 0.0
  %480 = vmatpush2.msra.mxu0 0.0
  %481 = vmatprep.subr.mxu0 0.0
  %482 = vmatpush2.msra.mxu0 0.0
  %483 = vmatprep.subr.mxu0 0.0
  %484 = vmatpush2.msra.mxu0 0.0
  %485 = vmatprep.subr.mxu0 0.0
  %486 = vmatpush2.msra.mxu0 0.0
  %487 = vmatprep.subr.mxu0 0.0
  %488 = vmatpush2.msra.mxu0 0.0
  %489 = vmatprep.subr.mxu0 0.0
  %490 = vmatpush2.msra.mxu0 0.0
  %491 = vmatprep.mubr.f32.mxu0 0.0
  %492 = vmatmul.mubr.f32.gmra.mxu0 %v419
  %v493 = vpop.f32.mrf.mxu0
  %v494 = vadd.f32 %v410, %v493
  %v495 = vpop.f32.mrf.mxu0
  %496 = vmatprep.mubr.f32.mxu0 0.0
  %497 = vmatmul.mubr.f32.gmra.mxu0 %v422
  %v498 = vpop.f32.mrf.mxu0
  %v499 = vadd.f32 %v415, %v498
  %v500 = vpop.f32.mrf.mxu0
  %501 = vdwg.mxu0
  %v503 = vsel %vm332, %v314, 0
  %v506 = vsel %vm332, %v319, 0
  %v509 = vsel %vm339, %v71, 0
  %511 = vmatprep.subr.mxu0 0.0
  %512 = vmatpush1.msra.mxu0 0.0
  %513 = vmatprep.subr.mxu0 0.0
  %514 = vmatpush1.msra.mxu0 0.0
  %515 = vmatprep.subr.mxu0 0.0
  %516 = vmatpush1.msra.mxu0 0.0
  %517 = vmatprep.subr.mxu0 0.0
  %518 = vmatpush1.msra.mxu0 0.0
  %519 = vmatprep.subr.mxu0 0.0
  %520 = vmatpush1.msra.mxu0 0.0
  %521 = vmatprep.subr.mxu0 0.0
  %522 = vmatpush1.msra.mxu0 0.0
  %523 = vmatprep.subr.mxu0 0.0
  %524 = vmatpush1.msra.mxu0 0.0
  %525 = vmatprep.subr.mxu0 0.0
  %526 = vmatpush1.msra.mxu0 0.0
  %527 = vmatprep.subr.mxu0 0.0
  %528 = vmatpush1.msra.mxu0 0.0
  %529 = vmatprep.subr.mxu0 0.0
  %530 = vmatpush1.msra.mxu0 0.0
  %531 = vmatprep.subr.mxu0 0.0
  %532 = vmatpush1.msra.mxu0 0.0
  %533 = vmatprep.subr.mxu0 0.0
  %534 = vmatpush1.msra.mxu0 0.0
  %535 = vmatprep.subr.mxu0 0.0
  %536 = vmatpush1.msra.mxu0 0.0
  %537 = vmatprep.subr.mxu0 0.0
  %538 = vmatpush1.msra.mxu0 %v509
  %539 = vmatprep.subr.mxu0 0.0
  %540 = vmatpush1.msra.mxu0 %v70
  %541 = vmatprep.subr.mxu0 0.0
  %542 = vmatpush1.msra.mxu0 %v69
  %543 = vmatprep.subr.mxu0 0.0
  %544 = vmatpush2.msra.mxu0 0.0
  %545 = vmatprep.subr.mxu0 0.0
  %546 = vmatpush2.msra.mxu0 0.0
  %547 = vmatprep.subr.mxu0 0.0
  %548 = vmatpush2.msra.mxu0 0.0
  %549 = vmatprep.subr.mxu0 0.0
  %550 = vmatpush2.msra.mxu0 0.0
  %551 = vmatprep.subr.mxu0 0.0
  %552 = vmatpush2.msra.mxu0 0.0
  %553 = vmatprep.subr.mxu0 0.0
  %554 = vmatpush2.msra.mxu0 0.0
  %555 = vmatprep.subr.mxu0 0.0
  %556 = vmatpush2.msra.mxu0 0.0
  %557 = vmatprep.subr.mxu0 0.0
  %558 = vmatpush2.msra.mxu0 0.0
  %559 = vmatprep.subr.mxu0 0.0
  %560 = vmatpush2.msra.mxu0 0.0
  %561 = vmatprep.subr.mxu0 0.0
  %562 = vmatpush2.msra.mxu0 0.0
  %563 = vmatprep.subr.mxu0 0.0
  %564 = vmatpush2.msra.mxu0 0.0
  %565 = vmatprep.subr.mxu0 0.0
  %566 = vmatpush2.msra.mxu0 0.0
  %567 = vmatprep.subr.mxu0 0.0
  %568 = vmatpush2.msra.mxu0 0.0
  %569 = vmatprep.subr.mxu0 0.0
  %570 = vmatpush2.msra.mxu0 0.0
  %571 = vmatprep.subr.mxu0 0.0
  %572 = vmatpush2.msra.mxu0 0.0
  %573 = vmatprep.subr.mxu0 0.0
  %574 = vmatpush2.msra.mxu0 0.0
  %575 = vmatprep.mubr.f32.mxu0 0.0
  %576 = vmatmul.mubr.f32.gmra.mxu0 %v503
  %v577 = vpop.f32.mrf.mxu0
  %v578 = vadd.f32 0.0, %v577
  %v579 = vpop.f32.mrf.mxu0
  %580 = vmatprep.mubr.f32.mxu0 0.0
  %581 = vmatmul.mubr.f32.gmra.mxu0 %v506
  %v582 = vpop.f32.mrf.mxu0
  %v583 = vadd.f32 0.0, %v582
  %v584 = vpop.f32.mrf.mxu0
  %585 = vdwg.mxu0
  %v586 = vadd.f32 %v494, %v578
  %v587 = vadd.f32 %v499, %v583
  %v589 = vsel %vm332, %v324, 0
  %v592 = vsel %vm332, %v329, 0
  %v595 = vsel %vm339, %v81, 0
  %597 = vmatprep.subr.mxu0 0.0
  %598 = vmatpush1.msra.mxu0 0.0
  %599 = vmatprep.subr.mxu0 0.0
  %600 = vmatpush1.msra.mxu0 0.0
  %601 = vmatprep.subr.mxu0 0.0
  %602 = vmatpush1.msra.mxu0 0.0
  %603 = vmatprep.subr.mxu0 0.0
  %604 = vmatpush1.msra.mxu0 0.0
  %605 = vmatprep.subr.mxu0 0.0
  %606 = vmatpush1.msra.mxu0 0.0
  %607 = vmatprep.subr.mxu0 0.0
  %608 = vmatpush1.msra.mxu0 0.0
  %609 = vmatprep.subr.mxu0 0.0
  %610 = vmatpush1.msra.mxu0 0.0
  %611 = vmatprep.subr.mxu0 0.0
  %612 = vmatpush1.msra.mxu0 0.0
  %613 = vmatprep.subr.mxu0 0.0
  %614 = vmatpush1.msra.mxu0 0.0
  %615 = vmatprep.subr.mxu0 0.0
  %616 = vmatpush1.msra.mxu0 0.0
  %617 = vmatprep.subr.mxu0 0.0
  %618 = vmatpush1.msra.mxu0 0.0
  %619 = vmatprep.subr.mxu0 0.0
  %620 = vmatpush1.msra.mxu0 0.0
  %621 = vmatprep.subr.mxu0 0.0
  %622 = vmatpush1.msra.mxu0 0.0
  %623 = vmatprep.subr.mxu0 0.0
  %624 = vmatpush1.msra.mxu0 %v595
  %625 = vmatprep.subr.mxu0 0.0
  %626 = vmatpush1.msra.mxu0 %v80
  %627 = vmatprep.subr.mxu0 0.0
  %628 = vmatpush1.msra.mxu0 %v79
  %629 = vmatprep.subr.mxu0 0.0
  %630 = vmatpush2.msra.mxu0 0.0
  %631 = vmatprep.subr.mxu0 0.0
  %632 = vmatpush2.msra.mxu0 0.0
  %633 = vmatprep.subr.mxu0 0.0
  %634 = vmatpush2.msra.mxu0 0.0
  %635 = vmatprep.subr.mxu0 0.0
  %636 = vmatpush2.msra.mxu0 0.0
  %637 = vmatprep.subr.mxu0 0.0
  %638 = vmatpush2.msra.mxu0 0.0
  %639 = vmatprep.subr.mxu0 0.0
  %640 = vmatpush2.msra.mxu0 0.0
  %641 = vmatprep.subr.mxu0 0.0
  %642 = vmatpush2.msra.mxu0 0.0
  %643 = vmatprep.subr.mxu0 0.0
  %644 = vmatpush2.msra.mxu0 0.0
  %645 = vmatprep.subr.mxu0 0.0
  %646 = vmatpush2.msra.mxu0 0.0
  %647 = vmatprep.subr.mxu0 0.0
  %648 = vmatpush2.msra.mxu0 0.0
  %649 = vmatprep.subr.mxu0 0.0
  %650 = vmatpush2.msra.mxu0 0.0
  %651 = vmatprep.subr.mxu0 0.0
  %652 = vmatpush2.msra.mxu0 0.0
  %653 = vmatprep.subr.mxu0 0.0
  %654 = vmatpush2.msra.mxu0 0.0
  %655 = vmatprep.subr.mxu0 0.0
  %656 = vmatpush2.msra.mxu0 0.0
  %657 = vmatprep.subr.mxu0 0.0
  %658 = vmatpush2.msra.mxu0 0.0
  %659 = vmatprep.subr.mxu0 0.0
  %660 = vmatpush2.msra.mxu0 0.0
  %661 = vmatprep.mubr.f32.mxu0 0.0
  %662 = vmatmul.mubr.f32.gmra.mxu0 %v589
  %v663 = vpop.f32.mrf.mxu0
  %v664 = vadd.f32 0.0, %v663
  %v665 = vpop.f32.mrf.mxu0
  %666 = vmatprep.mubr.f32.mxu0 0.0
  %667 = vmatmul.mubr.f32.gmra.mxu0 %v592
  %v668 = vpop.f32.mrf.mxu0
  %v669 = vadd.f32 0.0, %v668
  %v670 = vpop.f32.mrf.mxu0
  %671 = vdwg.mxu0
  %v672 = vadd.f32 %v586, %v664
  %v673 = vadd.f32 %v587, %v669
  %675 = vset.pattern.permute.xlu0 0
  %676 = vperm.xlu0 %675, %v28
  %v677 = vpop.permute.xlu0 %676
  %680 = vset.pattern.permute.xlu0 0
  %681 = vperm.xlu0 %680, %v29
  %v682 = vpop.permute.xlu0 %681
  %v684 = vadd.f32 %v672, %v677
  %v685 = vadd.f32 %v673, %v682
  %v686 = vmax.f32 %v684, 0.0
  %v687 = vmax.f32 %v685, 0.0
  %v689 = vsel %vm332, %v192, 0
  %v692 = vsel %vm332, %v197, 0
  %694 = vmatprep.subr.mxu0 0.0
  %695 = vmatpush1.msra.mxu0 0.0
  %696 = vmatprep.subr.mxu0 0.0
  %697 = vmatpush1.msra.mxu0 0.0
  %698 = vmatprep.subr.mxu0 0.0
  %699 = vmatpush1.msra.mxu0 0.0
  %700 = vmatprep.subr.mxu0 0.0
  %701 = vmatpush1.msra.mxu0 0.0
  %702 = vmatprep.subr.mxu0 0.0
  %703 = vmatpush1.msra.mxu0 0.0
  %704 = vmatprep.subr.mxu0 0.0
  %705 = vmatpush1.msra.mxu0 0.0
  %706 = vmatprep.subr.mxu0 0.0
  %707 = vmatpush1.msra.mxu0 0.0
  %708 = vmatprep.subr.mxu0 0.0
  %709 = vmatpush1.msra.mxu0 0.0
  %710 = vmatprep.subr.mxu0 0.0
  %711 = vmatpush1.msra.mxu0 0.0
  %712 = vmatprep.subr.mxu0 0.0
  %713 = vmatpush1.msra.mxu0 0.0
  %714 = vmatprep.subr.mxu0 0.0
  %715 = vmatpush1.msra.mxu0 0.0
  %716 = vmatprep.subr.mxu0 0.0
  %717 = vmatpush1.msra.mxu0 0.0
  %718 = vmatprep.subr.mxu0 0.0
  %719 = vmatpush1.msra.mxu0 0.0
  %720 = vmatprep.subr.mxu0 0.0
  %721 = vmatpush1.msra.mxu0 %v509
  %722 = vmatprep.subr.mxu0 0.0
  %723 = vmatpush1.msra.mxu0 %v70
  %724 = vmatprep.subr.mxu0 0.0
  %725 = vmatpush1.msra.mxu0 %v69
  %726 = vmatprep.subr.mxu0 0.0
  %727 = vmatpush2.msra.mxu0 0.0
  %728 = vmatprep.subr.mxu0 0.0
  %729 = vmatpush2.msra.mxu0 0.0
  %730 = vmatprep.subr.mxu0 0.0
  %731 = vmatpush2.msra.mxu0 0.0
  %732 = vmatprep.subr.mxu0 0.0
  %733 = vmatpush2.msra.mxu0 0.0
  %734 = vmatprep.subr.mxu0 0.0
  %735 = vmatpush2.msra.mxu0 0.0
  %736 = vmatprep.subr.mxu0 0.0
  %737 = vmatpush2.msra.mxu0 0.0
  %738 = vmatprep.subr.mxu0 0.0
  %739 = vmatpush2.msra.mxu0 0.0
  %740 = vmatprep.subr.mxu0 0.0
  %741 = vmatpush2.msra.mxu0 0.0
  %742 = vmatprep.subr.mxu0 0.0
  %743 = vmatpush2.msra.mxu0 0.0
  %744 = vmatprep.subr.mxu0 0.0
  %745 = vmatpush2.msra.mxu0 0.0
  %746 = vmatprep.subr.mxu0 0.0
  %747 = vmatpush2.msra.mxu0 0.0
  %748 = vmatprep.subr.mxu0 0.0
  %749 = vmatpush2.msra.mxu0 0.0
  %750 = vmatprep.subr.mxu0 0.0
  %751 = vmatpush2.msra.mxu0 0.0
  %752 = vmatprep.subr.mxu0 0.0
  %753 = vmatpush2.msra.mxu0 0.0
  %754 = vmatprep.subr.mxu0 0.0
  %755 = vmatpush2.msra.mxu0 0.0
  %756 = vmatprep.subr.mxu0 0.0
  %757 = vmatpush2.msra.mxu0 0.0
  %758 = vmatprep.mubr.f32.mxu0 0.0
  %759 = vmatmul.mubr.f32.gmra.mxu0 %v689
  %v760 = vpop.f32.mrf.mxu0
  %v761 = vadd.f32 0.0, %v760
  %v762 = vpop.f32.mrf.mxu0
  %763 = vmatprep.mubr.f32.mxu0 0.0
  %764 = vmatmul.mubr.f32.gmra.mxu0 %v692
  %v765 = vpop.f32.mrf.mxu0
  %v766 = vadd.f32 0.0, %v765
  %v767 = vpop.f32.mrf.mxu0
  %768 = vdwg.mxu0
  %770 = vset.pattern.permute.xlu0 0
  %771 = vperm.xlu0 %770, %v32
  %v772 = vpop.permute.xlu0 %771
  %775 = vset.pattern.permute.xlu0 0
  %776 = vperm.xlu0 %775, %v33
  %v777 = vpop.permute.xlu0 %776
  %v780 = vsel %vm202, %v30, 0
  %v783 = vsel %vm202, %v31, 0
  %785 = vmatprep.subr.mxu0 0.0
  %786 = vmatpush1.msra.mxu0 0.0
  %787 = vmatprep.subr.mxu0 0.0
  %788 = vmatpush1.msra.mxu0 0.0
  %789 = vmatprep.subr.mxu0 0.0
  %790 = vmatpush1.msra.mxu0 0.0
  %791 = vmatprep.subr.mxu0 0.0
  %792 = vmatpush1.msra.mxu0 0.0
  %793 = vmatprep.subr.mxu0 0.0
  %794 = vmatpush1.msra.mxu0 0.0
  %795 = vmatprep.subr.mxu0 0.0
  %796 = vmatpush1.msra.mxu0 0.0
  %797 = vmatprep.subr.mxu0 0.0
  %798 = vmatpush1.msra.mxu0 0.0
  %799 = vmatprep.subr.mxu0 0.0
  %800 = vmatpush1.msra.mxu0 0.0
  %801 = vmatprep.subr.mxu0 0.0
  %802 = vmatpush1.msra.mxu0 0.0
  %803 = vmatprep.subr.mxu0 0.0
  %804 = vmatpush1.msra.mxu0 0.0
  %805 = vmatprep.subr.mxu0 0.0
  %806 = vmatpush1.msra.mxu0 0.0
  %807 = vmatprep.subr.mxu0 0.0
  %808 = vmatpush1.msra.mxu0 0.0
  %809 = vmatprep.subr.mxu0 0.0
  %810 = vmatpush1.msra.mxu0 0.0
  %811 = vmatprep.subr.mxu0 0.0
  %812 = vmatpush1.msra.mxu0 0.0
  %813 = vmatprep.subr.mxu0 0.0
  %814 = vmatpush1.msra.mxu0 %v687
  %815 = vmatprep.subr.mxu0 0.0
  %816 = vmatpush1.msra.mxu0 %v686
  %817 = vmatprep.subr.mxu0 0.0
  %818 = vmatpush2.msra.mxu0 0.0
  %819 = vmatprep.subr.mxu0 0.0
  %820 = vmatpush2.msra.mxu0 0.0
  %821 = vmatprep.subr.mxu0 0.0
  %822 = vmatpush2.msra.mxu0 0.0
  %823 = vmatprep.subr.mxu0 0.0
  %824 = vmatpush2.msra.mxu0 0.0
  %825 = vmatprep.subr.mxu0 0.0
  %826 = vmatpush2.msra.mxu0 0.0
  %827 = vmatprep.subr.mxu0 0.0
  %828 = vmatpush2.msra.mxu0 0.0
  %829 = vmatprep.subr.mxu0 0.0
  %830 = vmatpush2.msra.mxu0 0.0
  %831 = vmatprep.subr.mxu0 0.0
  %832 = vmatpush2.msra.mxu0 0.0
  %833 = vmatprep.subr.mxu0 0.0
  %834 = vmatpush2.msra.mxu0 0.0
  %835 = vmatprep.subr.mxu0 0.0
  %836 = vmatpush2.msra.mxu0 0.0
  %837 = vmatprep.subr.mxu0 0.0
  %838 = vmatpush2.msra.mxu0 0.0
  %839 = vmatprep.subr.mxu0 0.0
  %840 = vmatpush2.msra.mxu0 0.0
  %841 = vmatprep.subr.mxu0 0.0
  %842 = vmatpush2.msra.mxu0 0.0
  %843 = vmatprep.subr.mxu0 0.0
  %844 = vmatpush2.msra.mxu0 0.0
  %845 = vmatprep.subr.mxu0 0.0
  %846 = vmatpush2.msra.mxu0 0.0
  %847 = vmatprep.subr.mxu0 0.0
  %848 = vmatpush2.msra.mxu0 0.0
  %849 = vmatprep.mubr.f32.mxu0 0.0
  %850 = vmatmul.mubr.f32.gmra.mxu0 %v780
  %v851 = vpop.f32.mrf.mxu0
  %v852 = vadd.f32 %v772, %v851
  %v853 = vpop.f32.mrf.mxu0
  %854 = vmatprep.mubr.f32.mxu0 0.0
  %855 = vmatmul.mubr.f32.gmra.mxu0 %v783
  %v856 = vpop.f32.mrf.mxu0
  %v857 = vadd.f32 %v777, %v856
  %v858 = vpop.f32.mrf.mxu0
  %859 = vdwg.mxu0
  %v860 = vadd.f32 %v852, %v857
  %vm861 = vcmask 72704
  %v862 = vsel %vm861, %v860, 0.0
  %863 = vadd.xlane.f32.xlu0 %v862
  %v864 = vpop.xlane.xlu0 %863
  %v865 = vmul.f32 %v864, 0.055555556
  %v866 = vsub.f32 %v852, %v865
  %v867 = vsub.f32 %v857, %v865
  %v868 = vmul.f32 %v866, %v866
  %v869 = vmul.f32 %v867, %v867
  %v870 = vadd.f32 %v868, %v869
  %v871 = vsel %vm861, %v870, 0.0
  %872 = vadd.xlane.f32.xlu0 %v871
  %v873 = vpop.xlane.xlu0 %872
  %v874 = vmul.f32 %v873, 0.055555556
  %v875 = vadd.f32 %v874, 1e-05
  %v876 = vrsqrt.pop %v875
  %v877 = vmul.f32 %v876, %v34
  %879 = vset.pattern.permute.xlu0 0
  %880 = vperm.xlu0 %879, %v877
  %v881 = vpop.permute.xlu0 %880
  %v883 = vmul.f32 %v866, %v881
  %885 = vset.pattern.permute.xlu0 0
  %886 = vperm.xlu0 %885, %v35
  %v887 = vpop.permute.xlu0 %886
  %v889 = vadd.f32 %v883, %v887
  %v890 = vadd.f32 %v889, %v761
  %v891 = vmax.f32 %v890, 0.0
  %892 = vst.msk [vmem:[%s2] sm:$0xff] %vm861, %v891
  %v893 = vmul.f32 %v867, %v881
  %v894 = vadd.f32 %v893, %v887
  %v895 = vadd.f32 %v894, %v766
  %v896 = vmax.f32 %v895, 0.0
  %897 = vst.msk [vmem:[%s2 + $0x8] sm:$0xff] %vm861, %v896
  // Predicated region
  $region10: #{tsy_residual_block_1d.1} parent=0 // pred_check
    _
  $region11: #{tsy_residual_block_1d.1} parent=0 // pred_check_branch
    %899 = sbr.rel (0) target = $region13
  $region12: #{tsy_residual_block_1d.1} parent=0 // pred_region
    _
  $region13: #{tsy_residual_block_1d.1} parent=0 // pred_fallthru
    _
  // Predicated region
  $region14: #{tsy_residual_block_1d.1} parent=0 // pred_check
    _
  $region15: #{tsy_residual_block_1d.1} parent=0 // pred_check_branch
    %901 = sbr.rel (0) target = $region17
  $region16: #{tsy_residual_block_1d.1} parent=0 // pred_region
    _
  $region17: #{tsy_residual_block_1d.1} parent=0 // pred_fallthru
    _

</llo_original>
